<compile_context>
chip_gen: v7x
topology: tpu7x:2x2x1
jax: 0.10.0
libtpu: 0.0.40
codegen_flags: <defaults>
</compile_context>

<pallas_src>
import math
import functools

import jax
import jax.numpy as jnp
from jax import lax
from jax.experimental import pallas as pl
from jax.experimental.pallas import tpu as pltpu


_TILE_TARGET_BYTES = 8 * 1024 * 1024  # target input bytes per grid step


def _ceil_div(a: int, b: int) -> int:
    return -(-a // b)


# ---------------------------------------------------------------------------
# Pallas kernels
# ---------------------------------------------------------------------------
def _normalize(x_f32, inv_hidden, eps):
    # Two-pass mean/variance in f32 (xm is reused for the output, so this
    # costs the same as the one-pass E[x^2]-E[x]^2 form but avoids
    # catastrophic cancellation when |mean| >> std).
    mean = jnp.sum(x_f32, axis=-1, keepdims=True) * inv_hidden
    xm = x_f32 - mean
    var = jnp.sum(xm * xm, axis=-1, keepdims=True) * inv_hidden
    return xm * lax.rsqrt(var + eps)


def _ln_kernel_noaffine(x_ref, o_ref, *, eps, inv_hidden):
    x = x_ref[...].astype(jnp.float32)
    o_ref[...] = _normalize(x, inv_hidden, eps).astype(o_ref.dtype)


def _ln_kernel_weight(x_ref, w_ref, o_ref, *, eps, inv_hidden,
                      zero_centered_gamma):
    x = x_ref[...].astype(jnp.float32)
    w = w_ref[...].astype(jnp.float32)            # (1, hidden)
    if zero_centered_gamma:
        w = w + 1.0
    o_ref[...] = (_normalize(x, inv_hidden, eps) * w).astype(o_ref.dtype)


def _ln_kernel_affine(x_ref, wb_ref, o_ref, *, eps, inv_hidden,
                      zero_centered_gamma):
    x = x_ref[...].astype(jnp.float32)
    wb = wb_ref[...].astype(jnp.float32)          # (2, hidden): [gamma; beta]
    w = wb[0:1, :]
    b = wb[1:2, :]
    if zero_centered_gamma:
        w = w + 1.0
    o_ref[...] = (_normalize(x, inv_hidden, eps) * w + b).astype(o_ref.dtype)


# ---------------------------------------------------------------------------
# Hardware / tiling helpers
# ---------------------------------------------------------------------------
def _sublane_multiple(dtype) -> int:
    # Sublane tile: 8 rows for 32-bit, 16 for 16-bit, 32 for 8-bit dtypes.
    itemsize = jnp.dtype(dtype).itemsize
    return max(8, 32 // max(1, itemsize))


def _tpu_caps():
    """Best-effort (per-TC VMEM capacity bytes, #TensorCores sharing a grid)."""
    vmem_cap = 64 * 1024 * 1024   # conservative fallback (v7x per-TC physical)
    num_tc = 1
    try:
        info = pltpu.get_tpu_info()
        vmem_cap = int(getattr(info, "vmem_capacity_bytes", vmem_cap))
        chip_name = str(getattr(info, "chip_version", "")).lower()
        # v7x: 64 MiB per-TC VMEM, 2 TensorCores per chip. Guard against the
        # capacity query ever reporting chip-level (128 MiB) VMEM on v7x.
        if "7" in chip_name:
            vmem_cap = min(vmem_cap, 64 * 1024 * 1024)
            num_tc = 2
        elif vmem_cap <= 64 * 1024 * 1024:
            num_tc = 2
    except Exception:
        pass
    return vmem_cap, num_tc


def _default_vmem_limit_bytes(vmem_cap: int) -> int:
    # Request ~3/4 of per-TC physical VMEM, capped at 96 MiB (128 MiB chips)
    # and implicitly at 48 MiB on v7x-class chips (64 MiB physical).
    return int(min(vmem_cap * 3 // 4, 96 * 1024 * 1024))


def _choose_row_block(rows: int, hidden: int, dtype,
                      vmem_limit_bytes: int, num_tc: int) -> int:
    sub = _sublane_multiple(dtype)
    itemsize = jnp.dtype(dtype).itemsize
    rows_up = _ceil_div(rows, sub) * sub

    # (1) Byte-target tile: ~8 MiB of input per grid step so the ~0.35 us fixed
    #     per-step overhead is negligible against the step's HBM time.
    rb_target = max(sub, _TILE_TARGET_BYTES // max(1, hidden * itemsize))

    # (2) VMEM feasibility: double-buffered input + output tiles plus the f32
    #     working set inside the body; single overall safety factor (0.8).
    bytes_per_row_vmem = hidden * (2 * 2 * itemsize + 8)
    budget = int(vmem_limit_bytes * 0.8)
    rb_vmem = max(sub, budget // max(1, bytes_per_row_vmem))

    rb = min(rb_target, rb_vmem, rows_up)
    rb = max(sub, (rb // sub) * sub)

    if num_tc >= 2:
        # Megacore (v7x): dimension_semantics=("parallel",) shards the single
        # grid axis across TensorCores. Keep the step count a multiple of the
        # TC count (and >= num_tc) so no core idles for a whole step.
        if rows_up >= num_tc * sub:
            nsteps = _ceil_div(rows, rb)
            if nsteps % num_tc != 0:
                nsteps = _ceil_div(nsteps, num_tc) * num_tc
                rb = max(sub, _ceil_div(_ceil_div(rows_up, nsteps), sub) * sub)
            while _ceil_div(rows, rb) % num_tc != 0 and rb > sub:
                rb -= sub
    else:
        # Single TensorCore (v5e/v6e): the grid is a sequential loop, so extra
        # steps are pure overhead. Only split a large single/double block into
        # ~3 steps so DMA prefetch/writeback overlaps with compute.
        nsteps = _ceil_div(rows, rb)
        big_tile = rb * hidden * itemsize > _TILE_TARGET_BYTES // 2
        if nsteps < 3 and rows_up >= 3 * sub and big_tile:
            rb = max(sub, _ceil_div(_ceil_div(rows_up, 3), sub) * sub)

    return int(max(sub, min(rb, rows_up)))


def _cost_estimate(rows: int, hidden: int, itemsize: int, n_param_rows: int):
    return pl.CostEstimate(
        flops=int(10 * rows * hidden),
        transcendentals=int(rows),                       # one rsqrt per row
        bytes_accessed=int(2 * rows * hidden * itemsize
                           + n_param_rows * hidden * 4),
    )


# ---------------------------------------------------------------------------
# Wrapper
# ---------------------------------------------------------------------------
def fused_layer_norm(x,
                     weight=None,
                     bias=None,
                     *,
                     eps: float = 1e-5,
                     zero_centered_gamma: bool = False,
                     row_block: int = None,
                     vmem_limit_bytes: int = None,
                     narrow_hidden_xla_fallback: bool = False):
    """LayerNorm over the last axis of `x` via a Pallas TPU kernel."""
    orig_shape = x.shape
    hidden = orig_shape[-1]
    rows = math.prod(orig_shape[:-1]) if len(orig_shape) > 1 else 1

    # Optional fallback: hidden < 128 lanes means masked (vst.msk) stores; for
    # production workloads with such narrow hidden, plain XLA is competitive.
    if narrow_hidden_xla_fallback and hidden < 128:
        xf = x.astype(jnp.float32)
        m = jnp.mean(xf, axis=-1, keepdims=True)
        v = jnp.mean((xf - m) ** 2, axis=-1, keepdims=True)
        out = (xf - m) * lax.rsqrt(v + eps)
        if weight is not None:
            w = weight.astype(jnp.float32)
            if zero_centered_gamma:
                w = w + 1.0
            out = out * w
            if bias is not None:
                out = out + bias.astype(jnp.float32)
        return out.astype(x.dtype)

    x2 = x.reshape(rows, hidden)
    itemsize = jnp.dtype(x.dtype).itemsize

    vmem_cap, num_tc = _tpu_caps()
    if vmem_limit_bytes is None:
        vmem_limit_bytes = _default_vmem_limit_bytes(vmem_cap)
    if row_block is None:
        row_block = _choose_row_block(rows, hidden, x.dtype,
                                      vmem_limit_bytes, num_tc)

    grid = (pl.cdiv(rows, row_block),)  # no padding copies; partial last block

    x_spec = pl.BlockSpec((row_block, hidden), lambda i: (i, 0))
    o_spec = pl.BlockSpec((row_block, hidden), lambda i: (i, 0))
    out_shape = jax.ShapeDtypeStruct((rows, hidden), x.dtype)
    cparams = pltpu.CompilerParams(
        dimension_semantics=("parallel",),
        vmem_limit_bytes=int(vmem_limit_bytes),
    )
    inv_hidden = 1.0 / float(hidden)

    if weight is None:
        out = pl.pallas_call(
            functools.partial(_ln_kernel_noaffine, eps=eps,
                              inv_hidden=inv_hidden),
            out_shape=out_shape,
            grid=grid,
            in_specs=[x_spec],
            out_specs=o_spec,
            compiler_params=cparams,
            cost_estimate=_cost_estimate(rows, hidden, itemsize, 0),
        )(x2)
    elif bias is None:
        w2 = weight.reshape(1, hidden)
        w_spec = pl.BlockSpec((1, hidden), lambda i: (0, 0))
        out = pl.pallas_call(
            functools.partial(_ln_kernel_weight, eps=eps,
                              inv_hidden=inv_hidden,
                              zero_centered_gamma=zero_centered_gamma),
            out_shape=out_shape,
            grid=grid,
            in_specs=[x_spec, w_spec],
            out_specs=o_spec,
            compiler_params=cparams,
            cost_estimate=_cost_estimate(rows, hidden, itemsize, 1),
        )(x2, w2)
    else:
        # Fuse gamma+beta into one (2, hidden) constant operand: one DMA
        # descriptor per step instead of two.
        wb = jnp.stack([weight.reshape(hidden), bias.reshape(hidden)], axis=0)
        wb_spec = pl.BlockSpec((2, hidden), lambda i: (0, 0))
        out = pl.pallas_call(
            functools.partial(_ln_kernel_affine, eps=eps,
                              inv_hidden=inv_hidden,
                              zero_centered_gamma=zero_centered_gamma),
            out_shape=out_shape,
            grid=grid,
            in_specs=[x_spec, wb_spec],
            out_specs=o_spec,
            compiler_params=cparams,
            cost_estimate=_cost_estimate(rows, hidden, itemsize, 2),
        )(x2, wb)

    return out.reshape(orig_shape)


# ---------------------------------------------------------------------------
# Module-like wrapper mirroring FusedLayerNorm.__init__ semantics
# ---------------------------------------------------------------------------
class FusedLayerNormPallas:
    def __init__(self, hidden_size: int, elementwise_affine: bool = False,
                 eps: float = 1e-5, zero_centered_gamma: bool = False,
                 dtype=jnp.float32):
        self.hidden_size = hidden_size
        self.eps = eps
        self.elementwise_affine = elementwise_affine
        self.zero_centered_gamma = zero_centered_gamma
        if elementwise_affine:
            # reset_parameters(): gamma = 0 if zero_centered else 1; beta = 0
            if zero_centered_gamma:
                self.weight = jnp.zeros((hidden_size,), dtype=dtype)
            else:
                self.weight = jnp.ones((hidden_size,), dtype=dtype)
            self.bias = jnp.zeros((hidden_size,), dtype=dtype)
        else:
            self.weight = None
            self.bias = None

    def __call__(self, x):
        # TODO(synk): make_viewless_tensor / MakeViewlessTensor are PyTorch
        # autograd/view plumbing with no JAX equivalent (no-op here).
        return fused_layer_norm(
            x, self.weight, self.bias,
            eps=self.eps, zero_centered_gamma=self.zero_centered_gamma)


# ---------------------------------------------------------------------------
# Main
# ---------------------------------------------------------------------------
if __name__ == "__main__":
    key = jax.random.PRNGKey(0)
    batch, seq, hidden = 2, 8, 32
    x = jax.random.normal(key, (batch, seq, hidden), dtype=jnp.float32) * 2.0 + 0.5

    def ref_ln(x, w=None, b=None, eps=1e-5):
        m = jnp.mean(x, axis=-1, keepdims=True)
        v = jnp.mean((x - m) ** 2, axis=-1, keepdims=True)
        out = (x - m) / jnp.sqrt(v + eps)
        if w is not None:
            out = out * w
        if b is not None:
            out = out + b
        return out

    # Default module config: elementwise_affine=False
    ln = FusedLayerNormPallas(hidden_size=hidden, elementwise_affine=False)
    y = jax.block_until_ready(ln(x))

    # Affine + zero_centered_gamma variant (weight init zeros -> gamma=1 eff.)
    ln_aff = FusedLayerNormPallas(hidden_size=hidden, elementwise_affine=True,
                                  zero_centered_gamma=True)
    y_aff = jax.block_until_ready(ln_aff(x))

    assert jnp.allclose(y, ref_ln(x), atol=1e-4, rtol=1e-4)
    assert jnp.allclose(y_aff, ref_ln(x), atol=1e-4, rtol=1e-4)  # gamma=1, beta=0

    # Lane-dense hidden (>=128) with non-trivial affine params.
    k1, k2, k3 = jax.random.split(jax.random.PRNGKey(0), 3)
    hidden2 = 256
    x2 = jax.random.normal(k1, (batch, seq, hidden2), dtype=jnp.float32)
    w2 = jax.random.normal(k2, (hidden2,), dtype=jnp.float32) * 0.1 + 1.0
    b2 = jax.random.normal(k3, (hidden2,), dtype=jnp.float32) * 0.1
    y2 = jax.block_until_ready(fused_layer_norm(x2, w2, b2, eps=1e-5))
    assert jnp.allclose(y2, ref_ln(x2, w2, b2), atol=1e-4, rtol=1e-4)

    print("KERNEL_OK")
</pallas_src>

<mosaic_0001>
module attributes {stable_mosaic.version = 11 : i64} {
  func.func @_ln_kernel_noaffine(%arg0: i32, %arg1: memref<16x32xf32, #tpu.memory_space<vmem>>, %arg2: memref<16x32xf32, #tpu.memory_space<vmem>>) attributes {dimension_semantics = [#tpu.dimension_semantics<parallel>], iteration_bounds = array<i64: 1>, scalar_prefetch = 0 : i64, scratch_operands = 0 : i64, tpu.core_type = #tpu.core_type<tc>, window_params = [{transform_indices = @transform_0, window_bounds = array<i64: 16, 32>}, {transform_indices = @transform_1, window_bounds = array<i64: 16, 32>}]} {
    %c0 = arith.constant 0 : index
    %c0_0 = arith.constant 0 : index
    %0 = vector.load %arg1[%c0, %c0_0] : memref<16x32xf32, #tpu.memory_space<vmem>>, vector<16x32xf32>
    %cst = arith.constant dense<0.000000e+00> : vector<16xf32>
    %1 = vector.multi_reduction <add>, %0, %cst [1] : vector<16x32xf32> to vector<16xf32>
    %2 = vector.shape_cast %1 : vector<16xf32> to vector<16x1xf32>
    %cst_1 = arith.constant 3.125000e-02 : f32
    %3 = vector.broadcast %cst_1 : f32 to vector<16x1xf32>
    %4 = arith.mulf %2, %3 : vector<16x1xf32>
    %5 = vector.broadcast %4 : vector<16x1xf32> to vector<16x32xf32>
    %6 = arith.subf %0, %5 : vector<16x32xf32>
    %7 = arith.mulf %6, %6 : vector<16x32xf32>
    %cst_2 = arith.constant dense<0.000000e+00> : vector<16xf32>
    %8 = vector.multi_reduction <add>, %7, %cst_2 [1] : vector<16x32xf32> to vector<16xf32>
    %9 = vector.shape_cast %8 : vector<16xf32> to vector<16x1xf32>
    %cst_3 = arith.constant 3.125000e-02 : f32
    %10 = vector.broadcast %cst_3 : f32 to vector<16x1xf32>
    %11 = arith.mulf %9, %10 : vector<16x1xf32>
    %cst_4 = arith.constant 9.99999974E-6 : f32
    %12 = vector.broadcast %cst_4 : f32 to vector<16x1xf32>
    %13 = arith.addf %11, %12 : vector<16x1xf32>
    %14 = math.rsqrt %13 : vector<16x1xf32>
    %15 = vector.broadcast %14 : vector<16x1xf32> to vector<16x32xf32>
    %16 = arith.mulf %6, %15 : vector<16x32xf32>
    %c0_5 = arith.constant 0 : index
    %c0_6 = arith.constant 0 : index
    %17 = vector.load %arg2[%c0_5, %c0_6] : memref<16x32xf32, #tpu.memory_space<vmem>>, vector<16x32xf32>
    tpu.vector_store %arg2[%c0_5, %c0_6], %16 {strides = array<i32>} : memref<16x32xf32, #tpu.memory_space<vmem>>, vector<16x32xf32>,
    return
  }
  func.func @transform_0(%arg0: i32) -> (i32, i32) {
    %c0_i32 = arith.constant 0 : i32
    %c0_i32_0 = arith.constant 0 : i32
    return %arg0, %c0_i32 : i32, i32
  }
  func.func @transform_1(%arg0: i32) -> (i32, i32) {
    %c0_i32 = arith.constant 0 : i32
    %c0_i32_0 = arith.constant 0 : i32
    return %arg0, %c0_i32 : i32, i32
  }
}

</mosaic_0001>

<llo_original>
// kernel: tpu_custom_call.1
$region0: #{tpu_custom_call.1}
  #allocation0 [shape = 'u32[]', space=smem, size = 0x4, offset = 0x4, fixed_abs, tag = 'smem constant byte address 0x4 - core index']
  #allocation1 [shape = 'u32[144,128]{1,0:T(1,128)}', space=vmem, size = 0x12000, scoped, tag = 'internal scratch']
  %s0 = inlined_call_operand.hbm [shape: f32[16,32], index: 0, kind: input, shape index: {}]
  %s1 = inlined_call_operand.hbm [shape: f32[16,32], index: 1, kind: output, shape index: {}]
  %s2 = sld [smem:[#allocation0]]
  $region18: #{tpu_custom_call.1} parent=0
    _
  %s4 = ssub.s32 1, %s2
  %s5 = scalar_select 0, %s4, %s2
  $region1: #{tpu_custom_call.1} parent=0
    #allocation2 [shape = 'u8[8192]{0}', space=vmem, size = 0x2000, scoped, tag = 'input window, operand 0, single buffered']
    #allocation3 [shape = 's32[1]{0}', space=sflag, size = 0x4, scoped, tag = 'scoped memory for tpu_custom_call.1']
    #allocation4 [shape = 's32[1]{0}', space=sflag, size = 0x4, scoped, tag = 'scoped memory for tpu_custom_call.1']
    #allocation5 [shape = 'u8[8192]{0}', space=vmem, size = 0x2000, scoped, tag = 'output window, operand 0, single buffered']
    %6 = vsyncpa [#allocation3], 0
    %7 = vsyncpa [#allocation4], 0
    // Predicated region
    $region2: #{tpu_custom_call.1} parent=1 // pred_check
      _
    $region3: #{tpu_custom_call.1} parent=1 // pred_check_branch
      %9 = sbr.rel (0) target = $region5
    $region4: #{tpu_custom_call.1} parent=1 // pred_region
      %s11 = ssub.s32 256, 256
      %12 = vsyncadd [#allocation3], %s11
      %s13 = sshll.u32 [#allocation2], 4
      %s14 = int_to_ptr.vmem [resolvable:$true] %s13
      %19 = dma.hbm_to_vmem [thread:$0]  %s0, 256, %s14, [#allocation3], 128, 128, 8
    $region5: #{tpu_custom_call.1} parent=1 // pred_fallthru
      _
    // Predicated region
    $region6: #{tpu_custom_call.1} parent=1 // pred_check
      _
    $region7: #{tpu_custom_call.1} parent=1 // pred_check_branch
      %21 = sbr.rel (0) target = $region9
    $region8: #{tpu_custom_call.1} parent=1 // pred_region
      %22 = dma.done [#allocation3], 256
    $region9: #{tpu_custom_call.1} parent=1 // pred_fallthru
      _
    %v23 = vld [vmem:[#allocation2] sm:$0xff]
    %v24 = vld [vmem:[#allocation2 + $0x8] sm:$0xff]
    %vm25 = vcmask 261120
    %v26 = vsel %vm25, %v23, 0.0
    %27 = vadd.xlane.f32.xlu0 %v26
    %v28 = vpop.xlane.xlu0 %27
    %v29 = vsel %vm25, %v24, 0.0
    %30 = vadd.xlane.f32.xlu0 %v29
    %v31 = vpop.xlane.xlu0 %30
    %v32 = vmul.f32 %v28, 0.03125
    %v33 = vmul.f32 %v31, 0.03125
    %v34 = vsub.f32 %v23, %v32
    %v35 = vsub.f32 %v24, %v33
    %v36 = vmul.f32 %v34, %v34
    %v37 = vmul.f32 %v35, %v35
    %v38 = vsel %vm25, %v36, 0.0
    %39 = vadd.xlane.f32.xlu0 %v38
    %v40 = vpop.xlane.xlu0 %39
    %v41 = vsel %vm25, %v37, 0.0
    %42 = vadd.xlane.f32.xlu0 %v41
    %v43 = vpop.xlane.xlu0 %42
    %v44 = vmul.f32 %v40, 0.03125
    %v45 = vmul.f32 %v43, 0.03125
    %v46 = vadd.f32 %v44, 1e-05
    %v47 = vadd.f32 %v45, 1e-05
    %v48 = vrsqrt.pop %v46
    %v49 = vrsqrt.pop %v47
    %v50 = vmul.f32 %v34, %v48
    %v51 = vmul.f32 %v35, %v49
    %52 = vst.msk [vmem:[#allocation5] sm:$0xff] %vm25, %v50
    %53 = vst.msk [vmem:[#allocation5 + $0x8] sm:$0xff] %vm25, %v51
    // Predicated region
    $region10: #{tpu_custom_call.1} parent=1 // pred_check
      _
    $region11: #{tpu_custom_call.1} parent=1 // pred_check_branch
      %55 = sbr.rel (0) target = $region13
    $region12: #{tpu_custom_call.1} parent=1 // pred_region
      %s57 = ssub.s32 256, 256
      %58 = vsyncadd [#allocation4], %s57
      %s59 = sshll.u32 [#allocation5], 4
      %s60 = int_to_ptr.vmem [resolvable:$true] %s59
      %65 = dma.vmem_to_hbm [thread:$0]  %s60, 256, %s1, [#allocation4], 128, 128, 8
    $region13: #{tpu_custom_call.1} parent=1 // pred_fallthru
      _
    // Predicated region
    $region14: #{tpu_custom_call.1} parent=1 // pred_check
      _
    $region15: #{tpu_custom_call.1} parent=1 // pred_check_branch
      %67 = sbr.rel (0) target = $region17
    $region16: #{tpu_custom_call.1} parent=1 // pred_region
      %68 = dma.done [#allocation4], 256
    $region17: #{tpu_custom_call.1} parent=1 // pred_fallthru
      _
    %69 = vsyncpa [#allocation3], 1
    %70 = vsyncpa [#allocation4], 1

</llo_original>
